<compile_context>
chip_gen: v7x
topology: tpu7x:2x2x1
jax: 0.10.0
libtpu: 0.0.40
codegen_flags: <defaults>
</compile_context>

<pallas_src>
import functools

import jax
import jax.numpy as jnp
from jax import lax
from jax.experimental import pallas as pl
from jax.experimental.pallas import tpu as pltpu

ALPHA = 0.8
GAMMA = 2  # focal exponent; realized below as an explicit square (VPU, no pow)

_LANES = 128
_CHUNK_ROWS = 256        # strip-mine granularity inside a tile (128 KiB f32)
_MAX_BLOCK_ROWS = 2048   # 1 MiB f32 per input tile per pipeline buffer


def _cdiv(a, b):
    return -(-a // b)


def _round_up(a, m):
    return _cdiv(a, m) * m


def _focal_loss_kernel(x_ref, t_ref, o_ref, *, rows, block_rows, chunk_rows,
                       needs_mask):
    i = pl.program_id(0)
    nchunks = block_rows // chunk_rows

    def chunk_focal(c):
        r0 = pl.multiple_of(c * chunk_rows, chunk_rows)
        x = x_ref[pl.ds(r0, chunk_rows), :].astype(jnp.float32)
        t = t_ref[pl.ds(r0, chunk_rows), :].astype(jnp.float32)
        # Stable BCE-with-logits: 3 EUP ops per element in total (exp, log,
        # and the exp(-bce) below).  torch.clamp(sigmoid, 0, 1) is a no-op.
        bce = jnp.maximum(x, 0.0) - t * x + jnp.log(1.0 + jnp.exp(-jnp.abs(x)))
        d = 1.0 - jnp.exp(-bce)
        return ALPHA * d * d * bce       # explicit square, not a float pow

    def sublane_partial(f):
        # (chunk_rows, 128) -> (8, 128): pure VPU adds across sublane groups,
        # no XLU / MXU / scalar chain involved.
        return jnp.sum(f.reshape(chunk_rows // 8, 8, _LANES), axis=0)

    def reduce_tile(masked):
        if masked:
            limit = rows - i * block_rows  # valid rows in this (last) tile
            base = lax.broadcasted_iota(jnp.int32, (chunk_rows, _LANES), 0)

        def body(c, acc):
            f = chunk_focal(c)
            if masked:
                row = base + c * chunk_rows
                f = jnp.where(row < limit, f, 0.0)
            return acc + sublane_partial(f)

        return lax.fori_loop(0, nchunks, body,
                             jnp.zeros((8, _LANES), jnp.float32), unroll=True)

    if needs_mask:
        last = pl.num_programs(0) - 1

        @pl.when(i != last)
        def _():
            o_ref[...] = reduce_tile(False)[None]

        @pl.when(i == last)
        def _():
            # Last block over-runs the (rows, 128) array; zero the garbage rows.
            o_ref[...] = reduce_tile(True)[None]
    else:
        o_ref[...] = reduce_tile(False)[None]


def focal_loss(inputs, targets):
    """Pallas implementation of FocalLoss.forward (alpha=0.8, gamma=2)."""
    x = jnp.ravel(jnp.asarray(inputs))
    t = jnp.ravel(jnp.asarray(targets))
    n = x.shape[0]

    # View the flat vector as (rows, 128) so the last dim maps onto the lanes.
    # Only pad (a real HBM copy) when n is not lane-aligned or too small for a
    # full (8, 128) sublane tile; padded elements use (x=-200, t=0), which give
    # exactly zero focal loss under the stable BCE form, so they need no mask.
    n_pad = max(_round_up(n, _LANES), 8 * _LANES)
    if n_pad != n:
        pad = n_pad - n
        x = jnp.pad(x, (0, pad), constant_values=-200.0)
        t = jnp.pad(t, (0, pad), constant_values=0.0)
    rows = n_pad // _LANES

    # Tile rows. block_rows is always a multiple of 8; rows not divisible by
    # block_rows are handled by grid over-run + in-kernel row mask (no pad).
    # Aim for >= 2 blocks so the "parallel" axis splits across TCs on v7x.
    if rows <= 16:
        block_rows = 8
    elif rows <= 2 * _CHUNK_ROWS:
        block_rows = _round_up(_cdiv(rows, 2), 8)
    else:
        block_rows = min(_MAX_BLOCK_ROWS, _round_up(_cdiv(rows, 2), _CHUNK_ROWS))
    chunk_rows = min(_CHUNK_ROWS, block_rows)
    num_blocks = _cdiv(rows, block_rows)
    needs_mask = num_blocks * block_rows != rows

    x2 = x.reshape(rows, _LANES)
    t2 = t.reshape(rows, _LANES)

    kern = functools.partial(
        _focal_loss_kernel,
        rows=rows,
        block_rows=block_rows,
        chunk_rows=chunk_rows,
        needs_mask=needs_mask,
    )

    tile_spec = pl.BlockSpec((block_rows, _LANES), lambda i: (i, 0))

    partials = pl.pallas_call(
        kern,
        out_shape=jax.ShapeDtypeStruct((num_blocks, 8, _LANES), jnp.float32),
        grid_spec=pltpu.PrefetchScalarGridSpec(
            num_scalar_prefetch=0,
            grid=(num_blocks,),
            in_specs=[tile_spec, tile_spec],
            out_specs=pl.BlockSpec((1, 8, _LANES), lambda i: (i, 0, 0)),
        ),
        compiler_params=pltpu.CompilerParams(
            dimension_semantics=("parallel",),
            vmem_limit_bytes=32 * 1024 * 1024,
        ),
    )(x2, t2)

    # .mean() over the flattened vector; the second .mean() in the reference is
    # a no-op on a scalar.
    return jnp.sum(partials) / jnp.float32(n)


def focal_loss_ref(inputs, targets):
    """Plain-JAX reference mirroring the PyTorch module for correctness checks."""
    x = jnp.asarray(inputs, jnp.float32).reshape(-1)
    t = jnp.asarray(targets, jnp.float32).reshape(-1)
    p = jnp.clip(jax.nn.sigmoid(x), 0.0, 1.0)
    log_p = jnp.maximum(jnp.log(p), -100.0)
    log_1mp = jnp.maximum(jnp.log(1.0 - p), -100.0)
    bce = -(t * log_p + (1.0 - t) * log_1mp)
    focal = ALPHA * (1.0 - jnp.exp(-bce)) ** GAMMA * bce
    return jnp.mean(focal)


if __name__ == "__main__":
    key = jax.random.PRNGKey(0)
    k1, k2 = jax.random.split(key)

    # NCHW logits and binary targets, small primary shape.
    x = jax.random.normal(k1, (2, 4, 16, 16), dtype=jnp.float32)
    t = jax.random.bernoulli(k2, p=0.5, shape=(2, 4, 16, 16)).astype(jnp.float32)

    loss = jax.block_until_ready(focal_loss(x, t))
    ref = jax.block_until_ready(focal_loss_ref(x, t))
    assert jnp.allclose(loss, ref, rtol=1e-5, atol=1e-6), (loss, ref)

    # Ragged-in-128 path (minimal neutral pad, no in-kernel mask).
    k3, k4 = jax.random.split(k2)
    x2 = jax.random.normal(k3, (3, 5, 33, 37), dtype=jnp.float32)
    t2 = jax.random.bernoulli(k4, p=0.3, shape=(3, 5, 33, 37)).astype(jnp.float32)
    loss2 = jax.block_until_ready(focal_loss(x2, t2))
    ref2 = jax.block_until_ready(focal_loss_ref(x2, t2))
    assert jnp.allclose(loss2, ref2, rtol=1e-5, atol=1e-6), (loss2, ref2)

    # Lane-aligned but block-ragged path (zero-copy, grid over-run + row mask).
    k5, k6 = jax.random.split(k4)
    x3 = jax.random.normal(k5, (1, 3, 40, 128), dtype=jnp.float32)
    t3 = jax.random.bernoulli(k6, p=0.5, shape=(1, 3, 40, 128)).astype(jnp.float32)
    loss3 = jax.block_until_ready(focal_loss(x3, t3))
    ref3 = jax.block_until_ready(focal_loss_ref(x3, t3))
    assert jnp.allclose(loss3, ref3, rtol=1e-5, atol=1e-6), (loss3, ref3)

    print("KERNEL_OK")
</pallas_src>

<mosaic_0001>
module attributes {stable_mosaic.version = 11 : i64} {
  func.func @_focal_loss_kernel(%arg0: i32, %arg1: memref<8x128xf32, #tpu.memory_space<vmem>>, %arg2: memref<8x128xf32, #tpu.memory_space<vmem>>, %arg3: memref<1x8x128xf32, #tpu.memory_space<vmem>>) attributes {dimension_semantics = [#tpu.dimension_semantics<parallel>], iteration_bounds = array<i64: 2>, scalar_prefetch = 0 : i64, scratch_operands = 0 : i64, tpu.core_type = #tpu.core_type<tc>, window_params = [{transform_indices = @transform_0, window_bounds = array<i64: 8, 128>}, {transform_indices = @transform_1, window_bounds = array<i64: 8, 128>}, {transform_indices = @transform_2, window_bounds = array<i64: 1, 8, 128>}]} {
    %cst = arith.constant 0.000000e+00 : f32
    %0 = vector.broadcast %cst : f32 to vector<8x128xf32>
    %c0_i32 = arith.constant 0 : i32
    %c8_i32 = arith.constant 8 : i32
    %1 = arith.muli %c0_i32, %c8_i32 : i32
    %2 = tpu.assume_multiple %1, 8 : i32
    %3 = arith.index_cast %2 : i32 to index
    %c0 = arith.constant 0 : index
    %4 = vector.load %arg1[%3, %c0] : memref<8x128xf32, #tpu.memory_space<vmem>>, vector<8x128xf32>
    %5 = arith.index_cast %2 : i32 to index
    %c0_0 = arith.constant 0 : index
    %6 = vector.load %arg2[%5, %c0_0] : memref<8x128xf32, #tpu.memory_space<vmem>>, vector<8x128xf32>
    %cst_1 = arith.constant 0.000000e+00 : f32
    %7 = vector.broadcast %cst_1 : f32 to vector<8x128xf32>
    %8 = arith.maximumf %4, %7 : vector<8x128xf32>
    %9 = arith.mulf %6, %4 : vector<8x128xf32>
    %10 = arith.subf %8, %9 : vector<8x128xf32>
    %11 = math.absf %4 : vector<8x128xf32>
    %cst_2 = arith.constant 0.000000e+00 : f32
    %12 = vector.broadcast %cst_2 : f32 to vector<8x128xf32>
    %13 = arith.subf %12, %11 : vector<8x128xf32>
    %14 = math.exp %13 : vector<8x128xf32>
    %cst_3 = arith.constant 1.000000e+00 : f32
    %15 = vector.broadcast %cst_3 : f32 to vector<8x128xf32>
    %16 = arith.addf %15, %14 : vector<8x128xf32>
    %17 = math.log %16 : vector<8x128xf32>
    %18 = arith.addf %10, %17 : vector<8x128xf32>
    %cst_4 = arith.constant 0.000000e+00 : f32
    %19 = vector.broadcast %cst_4 : f32 to vector<8x128xf32>
    %20 = arith.subf %19, %18 : vector<8x128xf32>
    %21 = math.exp %20 : vector<8x128xf32>
    %cst_5 = arith.constant 1.000000e+00 : f32
    %22 = vector.broadcast %cst_5 : f32 to vector<8x128xf32>
    %23 = arith.subf %22, %21 : vector<8x128xf32>
    %cst_6 = arith.constant 8.000000e-01 : f32
    %24 = vector.broadcast %cst_6 : f32 to vector<8x128xf32>
    %25 = arith.mulf %24, %23 : vector<8x128xf32>
    %26 = arith.mulf %25, %23 : vector<8x128xf32>
    %27 = arith.mulf %26, %18 : vector<8x128xf32>
    %28 = vector.shape_cast %27 : vector<8x128xf32> to vector<1x8x128xf32>
    %cst_7 = arith.constant dense<0.000000e+00> : vector<8x128xf32>
    %29 = vector.multi_reduction <add>, %28, %cst_7 [0] : vector<1x8x128xf32> to vector<8x128xf32>
    %30 = arith.addf %0, %29 : vector<8x128xf32>
    %c1_i32 = arith.constant 1 : i32
    %31 = vector.shape_cast %30 : vector<8x128xf32> to vector<1x8x128xf32>
    %c0_8 = arith.constant 0 : index
    %c0_9 = arith.constant 0 : index
    %c0_10 = arith.constant 0 : index
    %32 = vector.load %arg3[%c0_8, %c0_9, %c0_10] : memref<1x8x128xf32, #tpu.memory_space<vmem>>, vector<1x8x128xf32>
    tpu.vector_store %arg3[%c0_8, %c0_9, %c0_10], %31 {strides = array<i32>} : memref<1x8x128xf32, #tpu.memory_space<vmem>>, vector<1x8x128xf32>,
    return
  }
  func.func @transform_0(%arg0: i32) -> (i32, i32) {
    %c0_i32 = arith.constant 0 : i32
    %c0_i32_0 = arith.constant 0 : i32
    return %arg0, %c0_i32 : i32, i32
  }
  func.func @transform_1(%arg0: i32) -> (i32, i32) {
    %c0_i32 = arith.constant 0 : i32
    %c0_i32_0 = arith.constant 0 : i32
    return %arg0, %c0_i32 : i32, i32
  }
  func.func @transform_2(%arg0: i32) -> (i32, i32, i32) {
    %c0_i32 = arith.constant 0 : i32
    %c0_i32_0 = arith.constant 0 : i32
    %c0_i32_1 = arith.constant 0 : i32
    return %arg0, %c0_i32, %c0_i32_0 : i32, i32, i32
  }
}

</mosaic_0001>

<llo_original>
// kernel: tpu_custom_call.1
$region0: #{tpu_custom_call.1}
  #allocation0 [shape = 'u32[]', space=smem, size = 0x4, offset = 0x4, fixed_abs, tag = 'smem constant byte address 0x4 - core index']
  #allocation1 [shape = 'u32[144,128]{1,0:T(1,128)}', space=vmem, size = 0x12000, scoped, tag = 'internal scratch']
  %s0 = inlined_call_operand.hbm [shape: f32[16,128], index: 0, kind: input, shape index: {}]
  %s1 = inlined_call_operand.hbm [shape: f32[16,128], index: 1, kind: input, shape index: {}]
  %s2 = inlined_call_operand.hbm [shape: f32[2,8,128], index: 2, kind: output, shape index: {}]
  %s3 = sld [smem:[#allocation0]]
  $region49: #{tpu_custom_call.1} parent=0
    _
  %s5 = ssub.s32 1, %s3
  %s6 = scalar_select 0, %s5, %s3
  $region1: #{tpu_custom_call.1} parent=0
    #allocation2 [shape = 'u8[8192]{0}', space=vmem, size = 0x2000, scoped, tag = 'input window, operand 0']
    #allocation3 [shape = 's32[2]{0}', space=sflag, size = 0x8, scoped, tag = 'scoped memory for tpu_custom_call.1']
    #allocation4 [shape = 's32[2]{0}', space=sflag, size = 0x8, scoped, tag = 'scoped memory for tpu_custom_call.1']
    #allocation5 [shape = 'u8[8192]{0}', space=vmem, size = 0x2000, scoped, tag = 'input window, operand 1']
    #allocation6 [shape = 's32[2]{0}', space=sflag, size = 0x8, scoped, tag = 'scoped memory for tpu_custom_call.1']
    #allocation7 [shape = 'u8[8192]{0}', space=vmem, size = 0x2000, scoped, tag = 'output window, operand 0']
    %7 = vsyncpa [#allocation3], 0
    %s8 = scalar_lea.sflag [#allocation3], 1
    %9 = vsyncpa %s8, 0
    %10 = vsyncpa [#allocation6], 0
    %s11 = scalar_lea.sflag [#allocation6], 1
    %12 = vsyncpa %s11, 0
    %13 = vsyncpa [#allocation4], 0
    %s14 = scalar_lea.sflag [#allocation4], 1
    %15 = vsyncpa %s14, 0
    loop: start=0, step=1, limit=4
    $region2: #{tpu_custom_call.1} parent=1 // loop_pre_header
      _
    $region3: #{tpu_custom_call.1} parent=1 // loop_header
      %s17 = sphi 0, %s21
      %p18 = scmp.ge.s32.totalorder %s17, 4
      %s27 = sphi 0, %s29
      %s30 = sphi 0, %s27
      %s31 = sphi 0, %s30
      %s47 = sphi 0, %s31
      %s53 = sphi 0, %s55
      %s56 = sphi 0, %s53
      %s57 = sphi 0, %s56
      %s73 = sphi 0, %s57
      %s79 = sphi 0, %s81
      %s82 = sphi 0, %s79
      %s83 = sphi 0, %s82
      %s99 = sphi 0, %s83
    $region4: #{tpu_custom_call.1} parent=1 // loop_header_branch
      %20 = sbr.rel (%p18) target = $region8
    $region5: #{tpu_custom_call.1} parent=1 // loop_body
      %s22 = ssub.s32 %s17, 1
      %s23 = ssub.s32 %s17, 2
      %s24 = sadd.s32 %s17, 1
      %s25 = ssub.s32 %s17, %s24
      %p26 = scmp.eq.s32.totalorder %s25, 0
      %s28 = sadd.s32 %s27, 1
      %s29 = scalar_select %p26, %s27, %s28
      %p32 = pneg %p26
      %p33 = scmp.eq.s32.totalorder %s17, 1
      %p34 = por %p32, %p33
      %p35 = scmp.ne.s32.totalorder %s27, %s30
      %p36 = scmp.eq.s32.totalorder %s17, 0
      %p37 = por %p35, %p36
      %p38 = scmp.ne.s32.totalorder %s27, %s30
      %p39 = scmp.eq.s32.totalorder %s22, 1
      %p40 = por %p38, %p39
      %p41 = scmp.ne.s32.totalorder %s30, %s31
      %p42 = scmp.eq.s32.totalorder %s22, 0
      %p43 = por %p41, %p42
      %p44 = scmp.ne.s32.totalorder %s30, %s31
      %p45 = scmp.eq.s32.totalorder %s23, 1
      %p46 = por %p44, %p45
      %p48 = scmp.ne.s32.totalorder %s31, %s47
      %p49 = scmp.eq.s32.totalorder %s23, 0
      %p50 = por %p48, %p49
      %s51 = ssub.s32 %s17, %s24
      %p52 = scmp.eq.s32.totalorder %s51, 0
      %s54 = sadd.s32 %s53, 1
      %s55 = scalar_select %p52, %s53, %s54
      %p58 = pneg %p52
      %p59 = scmp.eq.s32.totalorder %s17, 1
      %p60 = por %p58, %p59
      %p61 = scmp.ne.s32.totalorder %s53, %s56
      %p62 = scmp.eq.s32.totalorder %s17, 0
      %p63 = por %p61, %p62
      %p64 = scmp.ne.s32.totalorder %s53, %s56
      %p65 = scmp.eq.s32.totalorder %s22, 1
      %p66 = por %p64, %p65
      %p67 = scmp.ne.s32.totalorder %s56, %s57
      %p68 = scmp.eq.s32.totalorder %s22, 0
      %p69 = por %p67, %p68
      %p70 = scmp.ne.s32.totalorder %s56, %s57
      %p71 = scmp.eq.s32.totalorder %s23, 1
      %p72 = por %p70, %p71
      %p74 = scmp.ne.s32.totalorder %s57, %s73
      %p75 = scmp.eq.s32.totalorder %s23, 0
      %p76 = por %p74, %p75
      %s77 = ssub.s32 %s17, %s24
      %p78 = scmp.eq.s32.totalorder %s77, 0
      %s80 = sadd.s32 %s79, 1
      %s81 = scalar_select %p78, %s79, %s80
      %p84 = pneg %p78
      %p85 = scmp.eq.s32.totalorder %s17, 1
      %p86 = por %p84, %p85
      %p87 = scmp.ne.s32.totalorder %s79, %s82
      %p88 = scmp.eq.s32.totalorder %s17, 0
      %p89 = por %p87, %p88
      %p90 = scmp.ne.s32.totalorder %s79, %s82
      %p91 = scmp.eq.s32.totalorder %s22, 1
      %p92 = por %p90, %p91
      %p93 = scmp.ne.s32.totalorder %s82, %s83
      %p94 = scmp.eq.s32.totalorder %s22, 0
      %p95 = por %p93, %p94
      %p96 = scmp.ne.s32.totalorder %s82, %s83
      %p97 = scmp.eq.s32.totalorder %s23, 1
      %p98 = por %p96, %p97
      %p100 = scmp.ne.s32.totalorder %s83, %s99
      %p101 = scmp.eq.s32.totalorder %s23, 0
      %p102 = por %p100, %p101
      %p103 = scmp.le.s32.totalorder 1, %s17
      %p104 = scmp.lt.s32.totalorder %s17, 3
      %p105 = pnand %p103, %p104
      %p106 = pneg %p105
      // Predicated region
      $region9: #{tpu_custom_call.1} parent=5 // pred_check
        _
      $region10: #{tpu_custom_call.1} parent=5 // pred_check_branch
        %108 = sbr.rel (%p105) target = $region12
      $region11: #{tpu_custom_call.1} parent=5 // pred_region
        %s109 = ssub.s32 %s17, 1
      $region12: #{tpu_custom_call.1} parent=5 // pred_fallthru
        _
      %p110 = scmp.lt.s32.totalorder %s17, 2
      // Predicated region
      $region13: #{tpu_custom_call.1} parent=5 // pred_check
        %p111 = pneg %p110
      $region14: #{tpu_custom_call.1} parent=5 // pred_check_branch
        %113 = sbr.rel (%p111) target = $region16
      $region15: #{tpu_custom_call.1} parent=5 // pred_region
        // Predicated region
        $region17: #{tpu_custom_call.1} parent=15 // pred_check
          %p114 = pneg %p37
        $region18: #{tpu_custom_call.1} parent=15 // pred_check_branch
          %116 = sbr.rel (%p114) target = $region20
        $region19: #{tpu_custom_call.1} parent=15 // pred_region
          %s117 = sand.u32 %s27, 1
          %s118 = scalar_lea.sflag [#allocation3], %s117
          %s119 = sand.u32 %s27, 1
          %s120 = smul.addr %s119, 8
          %s121 = scalar_lea.vmem [#allocation2], %s120
          %s123 = ssub.s32 128, 128
          %124 = vsyncadd %s118, %s123
          %s125 = smul.addr %s17, 128
          %s126 = scalar_lea.hbm %s0, %s125
          %s128 = sshll.u32 %s121, 4
          %s129 = int_to_ptr.vmem [resolvable:$true] %s128
          %131 = dma.hbm_to_vmem [thread:$0]  %s126, 128, %s129, %s118
        $region20: #{tpu_custom_call.1} parent=15 // pred_fallthru
          _
        // Predicated region
        $region21: #{tpu_custom_call.1} parent=15 // pred_check
          %p132 = pneg %p63
        $region22: #{tpu_custom_call.1} parent=15 // pred_check_branch
          %134 = sbr.rel (%p132) target = $region24
        $region23: #{tpu_custom_call.1} parent=15 // pred_region
          %s135 = sand.u32 %s53, 1
          %s136 = scalar_lea.sflag [#allocation6], %s135
          %s137 = sand.u32 %s53, 1
          %s138 = smul.addr %s137, 8
          %s139 = scalar_lea.vmem [#allocation5], %s138
          %s141 = ssub.s32 128, 128
          %142 = vsyncadd %s136, %s141
          %s143 = smul.addr %s17, 128
          %s144 = scalar_lea.hbm %s1, %s143
          %s146 = sshll.u32 %s139, 4
          %s147 = int_to_ptr.vmem [resolvable:$true] %s146
          %149 = dma.hbm_to_vmem [thread:$0]  %s144, 128, %s147, %s136
        $region24: #{tpu_custom_call.1} parent=15 // pred_fallthru
          _
      $region16: #{tpu_custom_call.1} parent=5 // pred_fallthru
        _
      %p150 = scmp.le.s32.totalorder 1, %s17
      %p151 = scmp.lt.s32.totalorder %s17, 3
      %p152 = pnand %p150, %p151
      %p153 = pneg %p152
      // Predicated region
      $region25: #{tpu_custom_call.1} parent=5 // pred_check
        _
      $region26: #{tpu_custom_call.1} parent=5 // pred_check_branch
        %155 = sbr.rel (%p152) target = $region28
      $region27: #{tpu_custom_call.1} parent=5 // pred_region
        %s156 = ssub.s32 %s17, 1
        %s157 = sand.u32 %s30, 1
        %s158 = scalar_lea.sflag [#allocation3], %s157
        %s159 = sand.u32 %s30, 1
        %s160 = smul.addr %s159, 8
        %s161 = scalar_lea.vmem [#allocation2], %s160
        // Predicated region
        $region29: #{tpu_custom_call.1} parent=27 // pred_check
          %p162 = pneg %p43
        $region30: #{tpu_custom_call.1} parent=27 // pred_check_branch
          %164 = sbr.rel (%p162) target = $region32
        $region31: #{tpu_custom_call.1} parent=27 // pred_region
          %165 = dma.done %s158, 128
        $region32: #{tpu_custom_call.1} parent=27 // pred_fallthru
          _
        %s166 = sand.u32 %s56, 1
        %s167 = scalar_lea.sflag [#allocation6], %s166
        %s168 = sand.u32 %s56, 1
        %s169 = smul.addr %s168, 8
        %s170 = scalar_lea.vmem [#allocation5], %s169
        // Predicated region
        $region33: #{tpu_custom_call.1} parent=27 // pred_check
          %p171 = pneg %p69
        $region34: #{tpu_custom_call.1} parent=27 // pred_check_branch
          %173 = sbr.rel (%p171) target = $region36
        $region35: #{tpu_custom_call.1} parent=27 // pred_region
          %174 = dma.done %s167, 128
        $region36: #{tpu_custom_call.1} parent=27 // pred_fallthru
          _
        %s175 = sand.u32 %s30, 1
        %s176 = scalar_lea.sflag [#allocation3], %s175
        %s177 = sand.u32 %s30, 1
        %s178 = smul.addr %s177, 8
        %s179 = scalar_lea.vmem [#allocation2], %s178
        %p180 = pneg %p43
        %p181 = pneg %p40
        %s182 = sand.u32 %s56, 1
        %s183 = scalar_lea.sflag [#allocation6], %s182
        %s184 = sand.u32 %s56, 1
        %s185 = smul.addr %s184, 8
        %s186 = scalar_lea.vmem [#allocation5], %s185
        %p187 = pneg %p69
        %p188 = pneg %p66
        %p189 = pneg %p95
        %p190 = pneg %p92
        %s191 = sand.u32 %s82, 1
        %s192 = scalar_lea.sflag [#allocation4], %s191
        %s193 = sand.u32 %s82, 1
        %s194 = smul.addr %s193, 8
        %s195 = scalar_lea.vmem [#allocation7], %s194
        %v196 = vld [vmem:[%s161] sm:$0xff]
        %v197 = vld [vmem:[%s170] sm:$0xff]
        %v198 = vmax.f32 %v196, 0.0
        %v199 = vmul.f32 %v197, %v196
        %v200 = vsub.f32 %v198, %v199
        %v201 = vand.u32 2147483647, %v196
        %v202 = vsub.f32 0.0, %v201
        %v203 = vmul.f32 %v202, 1.442695
        %v204 = vpow.pop %v203
        %v205 = vadd.f32 %v204, 1.0
        %v206 = vlog2.pop %v205
        %v207 = vmul.f32 %v206, 0.6931472
        %v208 = vadd.f32 %v200, %v207
        %v209 = vsub.f32 0.0, %v208
        %v210 = vmul.f32 %v209, 1.442695
        %v211 = vpow.pop %v210
        %v212 = vsub.f32 1.0, %v211
        %v213 = vmul.f32 %v212, 0.8
        %v214 = vmul.f32 %v213, %v212
        %v215 = vmul.f32 %v214, %v208
        %v216 = vadd.f32 %v215, 0.0
        %v217 = vadd.f32 %v216, 0.0
        %218 = vst [vmem:[%s195] sm:$0xff] %v217
        %s219 = sand.u32 %s82, 1
        %s220 = scalar_lea.sflag [#allocation4], %s219
        %s221 = sand.u32 %s82, 1
        %s222 = smul.addr %s221, 8
        %s223 = scalar_lea.vmem [#allocation7], %s222
        // Predicated region
        $region37: #{tpu_custom_call.1} parent=27 // pred_check
          %p224 = pneg %p92
        $region38: #{tpu_custom_call.1} parent=27 // pred_check_branch
          %226 = sbr.rel (%p224) target = $region40
        $region39: #{tpu_custom_call.1} parent=27 // pred_region
          %s228 = ssub.s32 128, 128
          %229 = vsyncadd %s220, %s228
          %s230 = smul.addr %s22, 128
          %s231 = scalar_lea.hbm %s2, %s230
          %s233 = sshll.u32 %s223, 4
          %s234 = int_to_ptr.vmem [resolvable:$true] %s233
          %236 = dma.vmem_to_hbm [thread:$0]  %s234, 128, %s231, %s220
        $region40: #{tpu_custom_call.1} parent=27 // pred_fallthru
          _
      $region28: #{tpu_custom_call.1} parent=5 // pred_fallthru
        _
      %p237 = scmp.le.s32.totalorder 2, %s17
      // Predicated region
      $region41: #{tpu_custom_call.1} parent=5 // pred_check
        %p238 = pneg %p237
      $region42: #{tpu_custom_call.1} parent=5 // pred_check_branch
        %240 = sbr.rel (%p238) target = $region44
      $region43: #{tpu_custom_call.1} parent=5 // pred_region
        %s241 = ssub.s32 %s17, 2
        // Predicated region
        $region45: #{tpu_custom_call.1} parent=43 // pred_check
          %p242 = pneg %p98
        $region46: #{tpu_custom_call.1} parent=43 // pred_check_branch
          %244 = sbr.rel (%p242) target = $region48
        $region47: #{tpu_custom_call.1} parent=43 // pred_region
          %s245 = sand.u32 %s83, 1
          %s246 = scalar_lea.sflag [#allocation4], %s245
          %s247 = sand.u32 %s83, 1
          %s248 = smul.addr %s247, 8
          %s249 = scalar_lea.vmem [#allocation7], %s248
          %250 = dma.done %s246, 128
        $region48: #{tpu_custom_call.1} parent=43 // pred_fallthru
          _
      $region44: #{tpu_custom_call.1} parent=5 // pred_fallthru
        _
    $region6: #{tpu_custom_call.1} parent=1 // loop_footer
      %s21 = sadd.s32 1, %s17
    $region7: #{tpu_custom_call.1} parent=1 // loop_footer_branch
      %16 = sbr.rel target = $region3
    $region8: #{tpu_custom_call.1} parent=1 // loop_exit
      _
    %251 = vsyncpa [#allocation3], 1
    %s252 = scalar_lea.sflag [#allocation3], 1
    %253 = vsyncpa %s252, 1
    %254 = vsyncpa [#allocation6], 1
    %s255 = scalar_lea.sflag [#allocation6], 1
    %256 = vsyncpa %s255, 1
    %257 = vsyncpa [#allocation4], 1
    %s258 = scalar_lea.sflag [#allocation4], 1
    %259 = vsyncpa %s258, 1

</llo_original>
